<compile_context>
chip_gen: v7x
topology: tpu7x:2x2x1
jax: 0.10.0
libtpu: 0.0.40
codegen_flags: <defaults>
</compile_context>

<pallas_src>
import jax
import jax.numpy as jnp
from jax.experimental import pallas as pl
from jax.experimental.pallas import tpu as pltpu


def _pair(v):
    if isinstance(v, (tuple, list)):
        assert len(v) == 2
        return int(v[0]), int(v[1])
    return int(v), int(v)


def _round_up(x, m):
    return (x + m - 1) // m * m


def _padded_bytes(shape, dtype):
    """VMEM footprint of a 2-D array, accounting for (8, 128) tile padding."""
    dims = list(shape)
    dims[-1] = _round_up(dims[-1], 128)
    if len(dims) >= 2:
        dims[-2] = _round_up(dims[-2], 8)
    n = 1
    for d in dims:
        n *= d
    return n * jnp.dtype(dtype).itemsize


def _pick_tm(m_total):
    """Lane-dense M tile: multiple of 128, prefer >=2 grid steps, cap at 2048."""
    m128 = _round_up(m_total, 128)
    if m128 <= 256:
        return m128
    half = _round_up(pl.cdiv(m_total, 2), 128)
    return min(2048, half)


def _gemm_bias_kernel(cols_ref, w_ref, b_ref, o_ref):
    """One lane-dense GEMM tile of the implicit convolution.

    cols_ref: (Kp, TM)  im2col columns (K in sublanes, M=N*OH*OW in lanes)
    w_ref:    (OC, Kp)  packed weights, grid-invariant (stay resident in VMEM)
    b_ref:    (OC, 1)   bias column (zeros when bias is ignored)
    o_ref:    (OC, TM)  lane-dense output tile

    The whole contraction is a single K=Kp MXU matmul; the (OC, TM) result is
    register-resident (a handful of vregs) and stored exactly once, unmasked.
    """
    acc = jnp.dot(w_ref[...], cols_ref[...], preferred_element_type=jnp.float32)
    o_ref[...] = (acc + b_ref[...]).astype(o_ref.dtype)


def _conv_gemm(cols, w2, bias_col, tm, out_dtype):
    kp, m_pad = cols.shape
    oc = w2.shape[0]
    grid = (m_pad // tm,)

    # VMEM budget: double-buffered cols/out tiles + resident weights/bias,
    # + 25% headroom; capped well under v7x's 64 MiB physical VMEM.
    vmem_bytes = (2 * _padded_bytes((kp, tm), cols.dtype)
                  + 2 * _padded_bytes((oc, tm), out_dtype)
                  + _padded_bytes((oc, kp), w2.dtype)
                  + _padded_bytes((oc, 1), bias_col.dtype))
    vmem_limit = int(min(max(vmem_bytes * 5 // 4, 1 << 20), 48 << 20))

    return pl.pallas_call(
        _gemm_bias_kernel,
        out_shape=jax.ShapeDtypeStruct((oc, m_pad), out_dtype),
        grid_spec=pltpu.PrefetchScalarGridSpec(
            num_scalar_prefetch=0,
            grid=grid,
            in_specs=[
                pl.BlockSpec((kp, tm), lambda i: (0, i)),   # column tile
                pl.BlockSpec((oc, kp), lambda i: (0, 0)),   # resident weights
                pl.BlockSpec((oc, 1), lambda i: (0, 0)),    # resident bias
            ],
            out_specs=pl.BlockSpec((oc, tm), lambda i: (0, i)),
        ),
        compiler_params=pltpu.CompilerParams(
            dimension_semantics=("parallel",),
            vmem_limit_bytes=vmem_limit),
    )(cols, w2, bias_col)


class AnySignConv:
    """JAX/Pallas port of anysign_conv (groups == 1 only).

    weight: (OC, C, KH, KW) PyTorch OIHW layout; bias: (OC,) or None.
    use_bf16: opt-in bf16 MXU operands (f32 accumulation); changes numerics.
    """

    def __init__(self, weight, bias, stride, padding, dilation, ignorebias,
                 groups=1, use_bf16=False):
        if groups != 1:
            raise NotImplementedError(
                "AnySignConv Pallas kernel supports groups == 1 only")
        self.oc, self.c, self.kh, self.kw = map(int, weight.shape)
        self.stride = _pair(stride)
        self.padding = _pair(padding)
        self.dilation = _pair(dilation)
        self.use_bf16 = use_bf16

        k_total = self.c * self.kh * self.kw
        self.k_total = k_total
        self.k_pad = _round_up(k_total, 8)

        def pack(w):
            # OIHW -> (OC, C*KH*KW), zero-padded in K to a sublane multiple.
            w2 = w.reshape(self.oc, k_total)
            return jnp.pad(w2, ((0, 0), (0, self.k_pad - k_total)))

        self.w_pos = pack(jnp.maximum(weight, 0.0))   # clamp(min=0)
        self.w_neg = pack(jnp.minimum(weight, 0.0))   # clamp(max=0)
        self.w_jus = pack(weight)

        if ignorebias or bias is None:
            # TODO(synk): PyTorch's clones keep fresh random biases when
            # conv.bias is None and ignorebias=False; treated as zero here.
            z = jnp.zeros((self.oc, 1), weight.dtype)
            self.b_pos = self.b_neg = self.b_jus = z
        else:
            bc = bias.reshape(self.oc, 1)
            self.b_pos = jnp.maximum(bc, 0.0)
            self.b_neg = jnp.minimum(bc, 0.0)
            self.b_jus = bc

    def _im2col(self, x_nchw, oh, ow):
        """(N, C, H, W) -> lane-dense columns (C*KH*KW, N*OH*OW)."""
        n, c, _, _ = x_nchw.shape
        (sh, sw), (ph, pw), (dh, dw) = self.stride, self.padding, self.dilation
        xp = jnp.pad(x_nchw, ((0, 0), (0, 0), (ph, ph), (pw, pw)))
        pats = []
        for ih in range(self.kh):
            for iw in range(self.kw):
                h0, w0 = ih * dh, iw * dw
                win = xp[:, :,
                         h0:h0 + (oh - 1) * sh + 1:sh,
                         w0:w0 + (ow - 1) * sw + 1:sw]      # (N, C, OH, OW)
                pats.append(win)
        pats = jnp.stack(pats, axis=0)                      # (KH*KW, N, C, OH, OW)
        cols = jnp.transpose(pats, (2, 0, 1, 3, 4))         # (C, KH*KW, N, OH, OW)
        # k = c*(KH*KW) + kh*KW + kw matches weight.reshape(OC, C*KH*KW).
        return cols.reshape(c * self.kh * self.kw, n * oh * ow)

    def __call__(self, mode, x_nchw):
        if mode == 'pos':
            w2, b = self.w_pos, self.b_pos
        elif mode == 'neg':
            w2, b = self.w_neg, self.b_neg
        elif mode == 'justasitis':
            w2, b = self.w_jus, self.b_jus
        else:
            raise NotImplementedError('anysign_conv notimpl mode: ' + str(mode))

        n, c, h, wd = x_nchw.shape
        assert c == self.c, (c, self.c)
        (sh, sw), (ph, pw), (dh, dw) = self.stride, self.padding, self.dilation
        oh = (h + 2 * ph - dh * (self.kh - 1) - 1) // sh + 1
        ow = (wd + 2 * pw - dw * (self.kw - 1) - 1) // sw + 1

        # Lane-dense im2col: K in sublanes, M = N*OH*OW in lanes.
        cols = self._im2col(x_nchw, oh, ow)
        m_total = cols.shape[1]
        cols = jnp.pad(cols, ((0, self.k_pad - self.k_total), (0, 0)))

        tm = _pick_tm(m_total)
        m_pad = _round_up(m_total, tm)
        if m_pad != m_total:
            cols = jnp.pad(cols, ((0, 0), (0, m_pad - m_total)))

        if self.use_bf16:
            cols = cols.astype(jnp.bfloat16)
            w2 = w2.astype(jnp.bfloat16)

        out = _conv_gemm(cols, w2, b.astype(jnp.float32), tm, x_nchw.dtype)
        # Kernel emits channel-major (OC, M): slice padding, reshape, to NCHW.
        out = out[:, :m_total].reshape(self.oc, n, oh, ow)
        return jnp.transpose(out, (1, 0, 2, 3))


def _ref_conv(x_nchw, w, b, stride, padding, dilation):
    out = jax.lax.conv_general_dilated(
        x_nchw, w,
        window_strides=(stride, stride),
        padding=((padding, padding), (padding, padding)),
        rhs_dilation=(dilation, dilation),
        dimension_numbers=('NCHW', 'OIHW', 'NCHW'))
    if b is not None:
        out = out + b[None, :, None, None]
    return out


if __name__ == "__main__":
    key = jax.random.PRNGKey(0)
    k_w, k_b, k_x = jax.random.split(key, 3)

    # Small config mirroring a typical Conv2d wrapped by anysign_conv.
    N, C, H, W = 2, 4, 16, 16
    OC, KH, KW = 8, 3, 3

    weight = jax.random.normal(k_w, (OC, C, KH, KW), jnp.float32)
    bias = jax.random.normal(k_b, (OC,), jnp.float32)
    x = jax.random.normal(k_x, (N, C, H, W), jnp.float32)

    ok = True
    # (stride, padding, dilation) configs; stride>1 / dilation>1 are now
    # handled by XLA window slicing in the wrapper, so they are exercised too.
    for stride, padding, dilation in [(1, 1, 1), (2, 1, 1), (1, 1, 2)]:
        mod = AnySignConv(weight, bias, stride, padding, dilation,
                          ignorebias=False)
        fwd = jax.jit(mod.__call__, static_argnums=0)

        refs = {
            'pos': _ref_conv(x, jnp.maximum(weight, 0.0),
                             jnp.maximum(bias, 0.0), stride, padding, dilation),
            'neg': _ref_conv(x, jnp.minimum(weight, 0.0),
                             jnp.minimum(bias, 0.0), stride, padding, dilation),
            'justasitis': _ref_conv(x, weight, bias, stride, padding, dilation),
        }
        for mode in ('pos', 'neg', 'justasitis'):
            out = jax.block_until_ready(fwd(mode, x))
            ref = refs[mode]
            if out.shape != ref.shape:
                ok = False
                print("SHAPE MISMATCH", mode, stride, padding, dilation,
                      out.shape, ref.shape)
            elif not jnp.allclose(out, ref, atol=1e-3, rtol=1e-3):
                ok = False
                print("VALUE MISMATCH", mode, stride, padding, dilation,
                      float(jnp.max(jnp.abs(out - ref))))

    if ok:
        print("KERNEL_OK")
</pallas_src>

<mosaic_0001>
module attributes {stable_mosaic.version = 11 : i64} {
  func.func @_gemm_bias_kernel(%arg0: i32, %arg1: memref<40x256xf32, #tpu.memory_space<vmem>>, %arg2: memref<8x40xf32, #tpu.memory_space<vmem>>, %arg3: memref<8x1xf32, #tpu.memory_space<vmem>>, %arg4: memref<8x256xf32, #tpu.memory_space<vmem>>) attributes {dimension_semantics = [#tpu.dimension_semantics<parallel>], iteration_bounds = array<i64: 2>, scalar_prefetch = 0 : i64, scratch_operands = 0 : i64, tpu.core_type = #tpu.core_type<tc>, window_params = [{transform_indices = @transform_0, window_bounds = array<i64: 40, 256>}, {pipeline_mode = #tpu.pipeline_mode<synchronous>, transform_indices = @transform_1, window_bounds = array<i64: 8, 40>}, {pipeline_mode = #tpu.pipeline_mode<synchronous>, transform_indices = @transform_2, window_bounds = array<i64: 8, 1>}, {transform_indices = @transform_3, window_bounds = array<i64: 8, 256>}]} {
    %c0 = arith.constant 0 : index
    %c0_0 = arith.constant 0 : index
    %0 = vector.load %arg2[%c0, %c0_0] : memref<8x40xf32, #tpu.memory_space<vmem>>, vector<8x40xf32>
    %c0_1 = arith.constant 0 : index
    %c0_2 = arith.constant 0 : index
    %1 = vector.load %arg1[%c0_1, %c0_2] : memref<40x256xf32, #tpu.memory_space<vmem>>, vector<40x256xf32>
    %cst = arith.constant dense<0.000000e+00> : vector<8x256xf32>
    %2 = tpu.matmul %0, %1, %cst {dimension_numbers = #tpu.dot_dimension_numbers<[1], [0], [0], [1], [0, 0, 1, 1], [], []>} : vector<8x40xf32>, vector<40x256xf32>, vector<8x256xf32> -> vector<8x256xf32>
    %c0_3 = arith.constant 0 : index
    %c0_4 = arith.constant 0 : index
    %3 = vector.load %arg3[%c0_3, %c0_4] : memref<8x1xf32, #tpu.memory_space<vmem>>, vector<8x1xf32>
    %4 = vector.broadcast %3 : vector<8x1xf32> to vector<8x256xf32>
    %5 = arith.addf %2, %4 : vector<8x256xf32>
    %c0_5 = arith.constant 0 : index
    %c0_6 = arith.constant 0 : index
    %6 = vector.load %arg4[%c0_5, %c0_6] : memref<8x256xf32, #tpu.memory_space<vmem>>, vector<8x256xf32>
    tpu.vector_store %arg4[%c0_5, %c0_6], %5 {strides = array<i32>} : memref<8x256xf32, #tpu.memory_space<vmem>>, vector<8x256xf32>,
    return
  }
  func.func @transform_0(%arg0: i32) -> (i32, i32) {
    %c0_i32 = arith.constant 0 : i32
    %c0_i32_0 = arith.constant 0 : i32
    return %c0_i32, %arg0 : i32, i32
  }
  func.func @transform_1(%arg0: i32) -> (i32, i32) {
    %c0_i32 = arith.constant 0 : i32
    %c0_i32_0 = arith.constant 0 : i32
    %c0_i32_1 = arith.constant 0 : i32
    return %c0_i32, %c0_i32_0 : i32, i32
  }
  func.func @transform_2(%arg0: i32) -> (i32, i32) {
    %c0_i32 = arith.constant 0 : i32
    %c0_i32_0 = arith.constant 0 : i32
    %c0_i32_1 = arith.constant 0 : i32
    return %c0_i32, %c0_i32_0 : i32, i32
  }
  func.func @transform_3(%arg0: i32) -> (i32, i32) {
    %c0_i32 = arith.constant 0 : i32
    %c0_i32_0 = arith.constant 0 : i32
    return %c0_i32, %arg0 : i32, i32
  }
}

</mosaic_0001>

<llo_original>
// kernel: a_call__.1
$region0: #{a_call__.1}
  #allocation0 [shape = 'u32[]', space=smem, size = 0x4, offset = 0x4, fixed_abs, tag = 'smem constant byte address 0x4 - core index']
  #allocation1 [shape = 'u32[144,128]{1,0:T(1,128)}', space=vmem, size = 0x12000, scoped, tag = 'internal scratch']
  %s0 = inlined_call_operand.vmem [shape: f32[40,512], index: 0, kind: input, shape index: {}]
  %s1 = inlined_call_operand.vmem [shape: f32[8,40], index: 1, kind: input, shape index: {}]
  %s2 = inlined_call_operand.vmem [shape: f32[8,1], index: 2, kind: input, shape index: {}]
  %s3 = inlined_call_operand.vmem [shape: f32[8,512], index: 3, kind: output, shape index: {}]
  %s4 = sld [smem:[#allocation0]]
  $region68: #{a_call__.1} parent=0
    _
  %s6 = ssub.s32 1, %s4
  %s7 = scalar_select 0, %s6, %s4
  $region1: #{a_call__.1} parent=0
    #allocation2 [shape = 'u8[81920]{0}', space=vmem, size = 0x14000, scoped, tag = 'input window, operand 0']
    loop: start=0, step=1, limit=4
    $region2: #{a_call__.1} parent=1 // loop_pre_header
      _
    $region3: #{a_call__.1} parent=1 // loop_header
      %s9 = sphi 0, %s13
      %p10 = scmp.ge.s32.totalorder %s9, 4
      %s19 = sphi 0, %s21
      %s22 = sphi 0, %s19
      %s23 = sphi 0, %s22
      %s39 = sphi 0, %s23
      %s43 = sphi 0, %s43
      %s45 = sphi 0, %s43
      %s46 = sphi 0, %s45
      %s60 = sphi 0, %s46
      %s64 = sphi 0, %s64
      %s66 = sphi 0, %s64
      %s67 = sphi 0, %s66
      %s81 = sphi 0, %s67
      %s87 = sphi 0, %s89
      %s90 = sphi 0, %s87
      %s91 = sphi 0, %s90
      %s107 = sphi 0, %s91
    $region4: #{a_call__.1} parent=1 // loop_header_branch
      %12 = sbr.rel (%p10) target = $region8
    $region5: #{a_call__.1} parent=1 // loop_body
      %s14 = ssub.s32 %s9, 1
      %s15 = ssub.s32 %s9, 2
      %s16 = sadd.s32 %s9, 1
      %s17 = ssub.s32 %s9, %s16
      %p18 = scmp.eq.s32.totalorder %s17, 0
      %s20 = sadd.s32 %s19, 1
      %s21 = scalar_select %p18, %s19, %s20
      %p24 = pneg %p18
      %p25 = scmp.eq.s32.totalorder %s9, 1
      %p26 = por %p24, %p25
      %p27 = scmp.ne.s32.totalorder %s19, %s22
      %p28 = scmp.eq.s32.totalorder %s9, 0
      %p29 = por %p27, %p28
      %p30 = scmp.ne.s32.totalorder %s19, %s22
      %p31 = scmp.eq.s32.totalorder %s14, 1
      %p32 = por %p30, %p31
      %p33 = scmp.ne.s32.totalorder %s22, %s23
      %p34 = scmp.eq.s32.totalorder %s14, 0
      %p35 = por %p33, %p34
      %p36 = scmp.ne.s32.totalorder %s22, %s23
      %p37 = scmp.eq.s32.totalorder %s15, 1
      %p38 = por %p36, %p37
      %p40 = scmp.ne.s32.totalorder %s23, %s39
      %p41 = scmp.eq.s32.totalorder %s15, 0
      %p42 = por %p40, %p41
      %s44 = sadd.s32 %s43, 1
      %p47 = scmp.eq.s32.totalorder %s9, 1
      %p48 = scmp.ne.s32.totalorder %s43, %s45
      %p49 = scmp.eq.s32.totalorder %s9, 0
      %p50 = por %p48, %p49
      %p51 = scmp.ne.s32.totalorder %s43, %s45
      %p52 = scmp.eq.s32.totalorder %s14, 1
      %p53 = por %p51, %p52
      %p54 = scmp.ne.s32.totalorder %s45, %s46
      %p55 = scmp.eq.s32.totalorder %s14, 0
      %p56 = por %p54, %p55
      %p57 = scmp.ne.s32.totalorder %s45, %s46
      %p58 = scmp.eq.s32.totalorder %s15, 1
      %p59 = por %p57, %p58
      %p61 = scmp.ne.s32.totalorder %s46, %s60
      %p62 = scmp.eq.s32.totalorder %s15, 0
      %p63 = por %p61, %p62
      %s65 = sadd.s32 %s64, 1
      %p68 = scmp.eq.s32.totalorder %s9, 1
      %p69 = scmp.ne.s32.totalorder %s64, %s66
      %p70 = scmp.eq.s32.totalorder %s9, 0
      %p71 = por %p69, %p70
      %p72 = scmp.ne.s32.totalorder %s64, %s66
      %p73 = scmp.eq.s32.totalorder %s14, 1
      %p74 = por %p72, %p73
      %p75 = scmp.ne.s32.totalorder %s66, %s67
      %p76 = scmp.eq.s32.totalorder %s14, 0
      %p77 = por %p75, %p76
      %p78 = scmp.ne.s32.totalorder %s66, %s67
      %p79 = scmp.eq.s32.totalorder %s15, 1
      %p80 = por %p78, %p79
      %p82 = scmp.ne.s32.totalorder %s67, %s81
      %p83 = scmp.eq.s32.totalorder %s15, 0
      %p84 = por %p82, %p83
      %s85 = ssub.s32 %s9, %s16
      %p86 = scmp.eq.s32.totalorder %s85, 0
      %s88 = sadd.s32 %s87, 1
      %s89 = scalar_select %p86, %s87, %s88
      %p92 = pneg %p86
      %p93 = scmp.eq.s32.totalorder %s9, 1
      %p94 = por %p92, %p93
      %p95 = scmp.ne.s32.totalorder %s87, %s90
      %p96 = scmp.eq.s32.totalorder %s9, 0
      %p97 = por %p95, %p96
      %p98 = scmp.ne.s32.totalorder %s87, %s90
      %p99 = scmp.eq.s32.totalorder %s14, 1
      %p100 = por %p98, %p99
      %p101 = scmp.ne.s32.totalorder %s90, %s91
      %p102 = scmp.eq.s32.totalorder %s14, 0
      %p103 = por %p101, %p102
      %p104 = scmp.ne.s32.totalorder %s90, %s91
      %p105 = scmp.eq.s32.totalorder %s15, 1
      %p106 = por %p104, %p105
      %p108 = scmp.ne.s32.totalorder %s91, %s107
      %p109 = scmp.eq.s32.totalorder %s15, 0
      %p110 = por %p108, %p109
      %p111 = scmp.le.s32.totalorder 1, %s9
      %p112 = scmp.lt.s32.totalorder %s9, 3
      %p113 = pnand %p111, %p112
      %p114 = pneg %p113
      // Predicated region
      $region9: #{a_call__.1} parent=5 // pred_check
        _
      $region10: #{a_call__.1} parent=5 // pred_check_branch
        %116 = sbr.rel (%p113) target = $region12
      $region11: #{a_call__.1} parent=5 // pred_region
        %s117 = ssub.s32 %s9, 1
        // Predicated region
        $region13: #{a_call__.1} parent=11 // pred_check
          %p118 = pneg %p56
        $region14: #{a_call__.1} parent=11 // pred_check_branch
          %120 = sbr.rel (%p118) target = $region16
        $region15: #{a_call__.1} parent=11 // pred_region
          _
        $region16: #{a_call__.1} parent=11 // pred_fallthru
          _
        // Predicated region
        $region17: #{a_call__.1} parent=11 // pred_check
          %p121 = pneg %p77
        $region18: #{a_call__.1} parent=11 // pred_check_branch
          %123 = sbr.rel (%p121) target = $region20
        $region19: #{a_call__.1} parent=11 // pred_region
          _
        $region20: #{a_call__.1} parent=11 // pred_fallthru
          _
      $region12: #{a_call__.1} parent=5 // pred_fallthru
        _
      %p124 = scmp.lt.s32.totalorder %s9, 2
      // Predicated region
      $region21: #{a_call__.1} parent=5 // pred_check
        %p125 = pneg %p124
      $region22: #{a_call__.1} parent=5 // pred_check_branch
        %127 = sbr.rel (%p125) target = $region24
      $region23: #{a_call__.1} parent=5 // pred_region
        // Predicated region
        $region25: #{a_call__.1} parent=23 // pred_check
          %p128 = pneg %p29
        $region26: #{a_call__.1} parent=23 // pred_check_branch
          %130 = sbr.rel (%p128) target = $region28
        $region27: #{a_call__.1} parent=23 // pred_region
          %s131 = sand.u32 %s19, 1
          %s132 = sand.u32 %s19, 1
          %s133 = smul.addr %s132, 80
          %s134 = scalar_lea.vmem [#allocation2], %s133
          %s135 = smul.u32 2, %s9
          %s136 = smul.addr %s135, 8
          %s137 = scalar_lea.vmem %s0, %s136
          // Predicated region
          $region29: #{a_call__.1} parent=27 // pred_check
            _
          $region30: #{a_call__.1} parent=27 // pred_check_branch
            %139 = sbr.rel (0) target = $region32
          $region31: #{a_call__.1} parent=27 // pred_region
            // Predicated region
            $region33: #{a_call__.1} parent=31 // pred_check
              _
            $region34: #{a_call__.1} parent=31 // pred_check_branch
              %141 = sbr.rel (0) target = $region36
            $region35: #{a_call__.1} parent=31 // pred_region
              loop: start=0, step=1, limit=1
              $region37: #{a_call__.1} parent=35 // loop_pre_header
                _
              $region38: #{a_call__.1} parent=35 // loop_header
                %s143 = sphi 0, %s147
                %p144 = scmp.ge.s32.totalorder %s143, 1
                %s148 = sphi %s137, %s137
                %s149 = sphi %s134, %s134
              $region39: #{a_call__.1} parent=35 // loop_header_branch
                %146 = sbr.rel (%p144) target = $region43
              $region40: #{a_call__.1} parent=35 // loop_body
                %v150 = vld [vmem:[%s148] sm:$0xff]
                %151 = vst [vmem:[%s149] sm:$0xff] %v150
                %v152 = vld [vmem:[%s148 + $0x8] sm:$0xff]
                %153 = vst [vmem:[%s149 + $0x8] sm:$0xff] %v152
                %v154 = vld [vmem:[%s148 + $0x20] sm:$0xff]
                %155 = vst [vmem:[%s149 + $0x10] sm:$0xff] %v154
                %v156 = vld [vmem:[%s148 + $0x28] sm:$0xff]
                %157 = vst [vmem:[%s149 + $0x18] sm:$0xff] %v156
                %v158 = vld [vmem:[%s148 + $0x40] sm:$0xff]
                %159 = vst [vmem:[%s149 + $0x20] sm:$0xff] %v158
                %v160 = vld [vmem:[%s148 + $0x48] sm:$0xff]
                %161 = vst [vmem:[%s149 + $0x28] sm:$0xff] %v160
                %v162 = vld [vmem:[%s148 + $0x60] sm:$0xff]
                %163 = vst [vmem:[%s149 + $0x30] sm:$0xff] %v162
                %v164 = vld [vmem:[%s148 + $0x68] sm:$0xff]
                %165 = vst [vmem:[%s149 + $0x38] sm:$0xff] %v164
                %v166 = vld [vmem:[%s148 + $0x80] sm:$0xff]
                %167 = vst [vmem:[%s149 + $0x40] sm:$0xff] %v166
                %v168 = vld [vmem:[%s148 + $0x88] sm:$0xff]
                %169 = vst [vmem:[%s149 + $0x48] sm:$0xff] %v168
              $region41: #{a_call__.1} parent=35 // loop_footer
                %s147 = sadd.s32 1, %s143
              $region42: #{a_call__.1} parent=35 // loop_footer_branch
                %142 = sbr.rel target = $region38
              $region43: #{a_call__.1} parent=35 // loop_exit
                _
            $region36: #{a_call__.1} parent=31 // pred_fallthru
              _
            // Predicated region
            $region44: #{a_call__.1} parent=31 // pred_check
              _
            $region45: #{a_call__.1} parent=31 // pred_check_branch
              %171 = sbr.rel target = $region47
            $region46: #{a_call__.1} parent=31 // pred_region
              _
            $region47: #{a_call__.1} parent=31 // pred_fallthru
              _
          $region32: #{a_call__.1} parent=27 // pred_fallthru
            _
          %172 = vnop
        $region28: #{a_call__.1} parent=23 // pred_fallthru
          _
      $region24: #{a_call__.1} parent=5 // pred_fallthru
        _
      %p173 = scmp.le.s32.totalorder 1, %s9
      %p174 = scmp.lt.s32.totalorder %s9, 3
      %p175 = pnand %p173, %p174
      %p176 = pneg %p175
      // Predicated region
      $region48: #{a_call__.1} parent=5 // pred_check
        _
      $region49: #{a_call__.1} parent=5 // pred_check_branch
        %178 = sbr.rel (%p175) target = $region51
      $region50: #{a_call__.1} parent=5 // pred_region
        %s179 = ssub.s32 %s9, 1
        %s180 = sand.u32 %s22, 1
        %s181 = sand.u32 %s22, 1
        %s182 = smul.addr %s181, 80
        %s183 = scalar_lea.vmem [#allocation2], %s182
        // Predicated region
        $region52: #{a_call__.1} parent=50 // pred_check
          %p184 = pneg %p35
        $region53: #{a_call__.1} parent=50 // pred_check_branch
          %186 = sbr.rel (%p184) target = $region55
        $region54: #{a_call__.1} parent=50 // pred_region
          _
        $region55: #{a_call__.1} parent=50 // pred_fallthru
          _
        %s187 = sand.u32 %s22, 1
        %s188 = sand.u32 %s22, 1
        %s189 = smul.addr %s188, 80
        %s190 = scalar_lea.vmem [#allocation2], %s189
        %p191 = pneg %p35
        %p192 = pneg %p32
        %p193 = pneg %p56
        %p194 = pneg %p53
        %p195 = pneg %p77
        %p196 = pneg %p74
        %p197 = pneg %p103
        %p198 = pneg %p100
        %s199 = smul.u32 2, %s14
        %p200 = scmp.lt.s32.totalorder %s199, 3
        %s201 = scalar_select %p200, %s199, 3
        %s202 = smul.addr %s201, 8
        %s203 = scalar_lea.vmem %s3, %s202
        %s204 = smul.u32 2, %s14
        %s205 = smul.u32 2, %s14
        %p206 = scmp.lt.s32.totalorder %s205, 3
        %s207 = scalar_select %p206, %s205, 3
        %s208 = smul.addr %s207, 8
        %s209 = scalar_lea.vmem %s3, %s208
        %s210 = smul.u32 2, %s14
        %v211 = vld [vmem:[%s1] sm:$0xff]
        %v212 = vld [vmem:[%s183] sm:$0xff]
        %v213 = vld [vmem:[%s183 + $0x8] sm:$0xff]
        %v214 = vld [vmem:[%s183 + $0x10] sm:$0xff]
        %v215 = vld [vmem:[%s183 + $0x18] sm:$0xff]
        %v216 = vld [vmem:[%s183 + $0x20] sm:$0xff]
        %v217 = vld [vmem:[%s183 + $0x28] sm:$0xff]
        %v218 = vld [vmem:[%s183 + $0x30] sm:$0xff]
        %v219 = vld [vmem:[%s183 + $0x38] sm:$0xff]
        %v220 = vld [vmem:[%s183 + $0x40] sm:$0xff]
        %v221 = vld [vmem:[%s183 + $0x48] sm:$0xff]
        %v222 = vld [vmem:[%s2] sm:$0xff]
        %224 = vset.pattern.permute.xlu0 0
        %225 = vperm.xlu0 %224, %v222
        %v226 = vpop.permute.xlu0 %225
        %vm228 = vcmask 326656
        %v230 = vsel %vm228, %v211, 0
        %232 = vmatprep.subr.mxu0 %v213
        %233 = vmatpush1.msra.mxu0 %v212
        %234 = vmatprep.subr.mxu0 %v215
        %235 = vmatpush1.msra.mxu0 %v214
        %236 = vmatprep.subr.mxu0 %v217
        %237 = vmatpush1.msra.mxu0 %v216
        %238 = vmatprep.subr.mxu0 %v219
        %239 = vmatpush1.msra.mxu0 %v218
        %240 = vmatprep.subr.mxu0 %v221
        %241 = vmatpush1.msra.mxu0 %v220
        %242 = vmatprep.subr.mxu0 0.0
        %243 = vmatpush1.msra.mxu0 0.0
        %244 = vmatprep.subr.mxu0 0.0
        %245 = vmatpush1.msra.mxu0 0.0
        %246 = vmatprep.subr.mxu0 0.0
        %247 = vmatpush1.msra.mxu0 0.0
        %248 = vmatprep.subr.mxu0 0.0
        %249 = vmatpush1.msra.mxu0 0.0
        %250 = vmatprep.subr.mxu0 0.0
        %251 = vmatpush1.msra.mxu0 0.0
        %252 = vmatprep.subr.mxu0 0.0
        %253 = vmatpush1.msra.mxu0 0.0
        %254 = vmatprep.subr.mxu0 0.0
        %255 = vmatpush1.msra.mxu0 0.0
        %256 = vmatprep.subr.mxu0 0.0
        %257 = vmatpush1.msra.mxu0 0.0
        %258 = vmatprep.subr.mxu0 0.0
        %259 = vmatpush1.msra.mxu0 0.0
        %260 = vmatprep.subr.mxu0 0.0
        %261 = vmatpush1.msra.mxu0 0.0
        %262 = vmatprep.subr.mxu0 0.0
        %263 = vmatpush1.msra.mxu0 0.0
        %264 = vmatprep.subr.mxu0 0.0
        %265 = vmatpush1.msra.mxu0 0.0
        %266 = vmatprep.subr.mxu0 0.0
        %267 = vmatpush1.msra.mxu0 0.0
        %268 = vmatprep.subr.mxu0 0.0
        %269 = vmatpush1.msra.mxu0 0.0
        %270 = vmatprep.subr.mxu0 0.0
        %271 = vmatpush1.msra.mxu0 0.0
        %272 = vmatprep.subr.mxu0 0.0
        %273 = vmatpush1.msra.mxu0 0.0
        %274 = vmatprep.subr.mxu0 0.0
        %275 = vmatpush1.msra.mxu0 0.0
        %276 = vmatprep.subr.mxu0 0.0
        %277 = vmatpush1.msra.mxu0 0.0
        %278 = vmatprep.subr.mxu0 0.0
        %279 = vmatpush1.msra.mxu0 0.0
        %280 = vmatprep.subr.mxu0 0.0
        %281 = vmatpush1.msra.mxu0 0.0
        %282 = vmatprep.subr.mxu0 0.0
        %283 = vmatpush1.msra.mxu0 0.0
        %284 = vmatprep.subr.mxu0 0.0
        %285 = vmatpush1.msra.mxu0 0.0
        %286 = vmatprep.subr.mxu0 0.0
        %287 = vmatpush1.msra.mxu0 0.0
        %288 = vmatprep.subr.mxu0 0.0
        %289 = vmatpush1.msra.mxu0 0.0
        %290 = vmatprep.subr.mxu0 0.0
        %291 = vmatpush1.msra.mxu0 0.0
        %292 = vmatprep.subr.mxu0 0.0
        %293 = vmatpush1.msra.mxu0 0.0
        %294 = vmatprep.subr.mxu0 0.0
        %295 = vmatpush1.msra.mxu0 0.0
        %296 = vmatprep.mubr.f32.mxu0 0.0
        %297 = vmatmul.mubr.f32.gmra.mrb[0].mxu0 %v230
        %v298 = vpop.f32.mrb[0].mxu0
        %v299 = vadd.f32 %v226, %v298
        %v300 = vpop.f32.mrb[0].mxu0
        %v301 = vadd.f32 %v226, %v300
        %302 = vdwg.mxu0
        %303 = vst [vmem:[%s209] sm:$0xff] %v299
        %304 = vst [vmem:[%s209 + $0x8] sm:$0xff] %v301
        %s305 = smul.u32 2, %s14
        %p306 = scmp.lt.s32.totalorder %s305, 3
        %s307 = scalar_select %p306, %s305, 3
        %s308 = smul.addr %s307, 8
        %s309 = scalar_lea.vmem %s3, %s308
        // Predicated region
        $region56: #{a_call__.1} parent=50 // pred_check
          %p310 = pneg %p100
        $region57: #{a_call__.1} parent=50 // pred_check_branch
          %312 = sbr.rel (%p310) target = $region59
        $region58: #{a_call__.1} parent=50 // pred_region
          %s313 = smul.u32 2, %s14
        $region59: #{a_call__.1} parent=50 // pred_fallthru
          _
      $region51: #{a_call__.1} parent=5 // pred_fallthru
        _
      %p314 = scmp.le.s32.totalorder 2, %s9
      // Predicated region
      $region60: #{a_call__.1} parent=5 // pred_check
        %p315 = pneg %p314
      $region61: #{a_call__.1} parent=5 // pred_check_branch
        %317 = sbr.rel (%p315) target = $region63
      $region62: #{a_call__.1} parent=5 // pred_region
        %s318 = ssub.s32 %s9, 2
        // Predicated region
        $region64: #{a_call__.1} parent=62 // pred_check
          %p319 = pneg %p106
        $region65: #{a_call__.1} parent=62 // pred_check_branch
          %321 = sbr.rel (%p319) target = $region67
        $region66: #{a_call__.1} parent=62 // pred_region
          %s322 = smul.u32 2, %s15
          %p323 = scmp.lt.s32.totalorder %s322, 3
          %s324 = scalar_select %p323, %s322, 3
          %s325 = smul.addr %s324, 8
          %s326 = scalar_lea.vmem %s3, %s325
        $region67: #{a_call__.1} parent=62 // pred_fallthru
          _
      $region63: #{a_call__.1} parent=5 // pred_fallthru
        _
    $region6: #{a_call__.1} parent=1 // loop_footer
      %s13 = sadd.s32 1, %s9
    $region7: #{a_call__.1} parent=1 // loop_footer_branch
      %8 = sbr.rel target = $region3
    $region8: #{a_call__.1} parent=1 // loop_exit
      _

</llo_original>
